<compile_context>
chip_gen: v6e
topology: v6e:2x2x1
jax: 0.10.0
libtpu: 0.0.40
codegen_flags: <defaults>
</compile_context>

<pallas_src>
import functools

import jax
import jax.numpy as jnp
from jax.experimental import pallas as pl
from jax.experimental.pallas import tpu as pltpu


# ----------------------------------------------------------------------------
# Pallas kernel: (tm, K) @ (K, E_pad) + bias, optionally LayerNorm over E
# ----------------------------------------------------------------------------

def _patch_embed_kernel(x_ref, w_ref, b_ref, g_ref, bb_ref, o_ref, *,
                        apply_norm, eps, inv_e):
    acc = jnp.dot(x_ref[...], w_ref[...], preferred_element_type=jnp.float32)
    y = acc + b_ref[...].astype(jnp.float32)
    if apply_norm:
        # One-pass stats over the (zero-padded) lane dim, divided by the TRUE
        # channel count E. Padded columns of y are exactly zero (zero weight
        # columns + zero bias), so sum / sum-of-squares are unaffected by the
        # padding; gamma/beta are zero-padded so padded output lanes stay 0.
        s = jnp.sum(y, axis=-1, keepdims=True)
        ss = jnp.sum(y * y, axis=-1, keepdims=True)
        mu = s * inv_e
        var = jnp.maximum(ss * inv_e - mu * mu, 0.0)
        y = (y - mu) * jax.lax.rsqrt(var + eps)            # rsqrt -> EUP slot
        y = y * g_ref[...].astype(jnp.float32) + bb_ref[...].astype(jnp.float32)
    o_ref[...] = y.astype(o_ref.dtype)


# ----------------------------------------------------------------------------
# Wrapper
# ----------------------------------------------------------------------------

def _round_up(x, m):
    return (x + m - 1) // m * m


def patch_embed_2d(x, w, b, gamma=None, beta=None, *, patch_size=4,
                   use_bf16=True, out_dtype=None, row_tile=4096, eps=1e-5):
    """PatchEmbed2D forward.

    x:     (B, Cin, H, W)  NCHW input
    w:     (E, Cin, p, p)  Conv2d weight (OIHW, as in PyTorch)
    b:     (E,)            Conv2d bias
    gamma/beta: (E,) LayerNorm affine params, or None for norm_layer=None
    use_bf16: bf16 MXU operands / bf16 output (default). f32-strict users
              should pass use_bf16=False (and out_dtype=jnp.float32).
    Returns (B, H//p, W//p, E) NHWC (matches the PyTorch module's output).
    """
    p = patch_size
    B, Cin, H, W = x.shape
    E = w.shape[0]
    Hp, Wp = H // p, W // p
    K = Cin * p * p
    M = B * Hp * Wp

    apply_norm = gamma is not None
    if gamma is None:
        gamma = jnp.ones((E,), jnp.float32)
    if beta is None:                       # guard: gamma given without beta
        beta = jnp.zeros((E,), jnp.float32)

    in_dtype = jnp.bfloat16 if use_bf16 else x.dtype
    if out_dtype is None:
        out_dtype = jnp.bfloat16 if use_bf16 else x.dtype

    # Cast BEFORE the relayout so the materialized (M, K) patch intermediate
    # (and the row-pad copy, if any) is written/read in the narrow dtype.
    x = x.astype(in_dtype)
    # Conv2d with stride == kernel floors the spatial dims: crop the remainder.
    x = x[:, :, :Hp * p, :Wp * p]
    # Non-overlapping patch extraction: pure layout permutation, no im2col
    # blow-up, so it stays as XLA glue.
    # TODO(synk): fold the patch relayout into the kernel (grid over
    # (B, Hp-tile), x BlockSpec (1, Cin, th*p, W)) to drop this HBM round trip.
    patches = x.reshape(B, Cin, Hp, p, Wp, p)
    patches = patches.transpose(0, 2, 4, 1, 3, 5).reshape(M, K)

    # Lane-dense output: pad E up to a multiple of 128 with zero columns in
    # weight / bias / gamma / beta so every output store is an unmasked vst.
    E_pad = _round_up(E, 128)
    w2d = w.reshape(E, K).T.astype(in_dtype)               # (K, E), (c,kh,kw)
    b_p = b.astype(jnp.float32)
    g_p = gamma.astype(jnp.float32)
    bb_p = beta.astype(jnp.float32)
    if E_pad != E:
        w2d = jnp.pad(w2d, ((0, 0), (0, E_pad - E)))
        b_p = jnp.pad(b_p, (0, E_pad - E))
        g_p = jnp.pad(g_p, (0, E_pad - E))
        bb_p = jnp.pad(bb_p, (0, E_pad - E))

    # Row tiling: large tiles (per-tile VMEM is only a few MiB even at 4096
    # rows) but capped so there are always >= 2 grid tiles -> the "parallel"
    # axis shards across both TensorCores on v7x. Zero-padded tail rows are
    # harmless (finite under rsqrt(var+eps)) and sliced off afterwards.
    tm = max(8, min(_round_up(row_tile, 8), _round_up(pl.cdiv(M, 2), 8)))
    M_pad = _round_up(M, tm)
    if M_pad != M:
        patches = jnp.pad(patches, ((0, M_pad - M), (0, 0)))
    num_tiles = M_pad // tm

    in_bytes = jnp.dtype(in_dtype).itemsize
    out_bytes = jnp.dtype(out_dtype).itemsize
    cost = pl.CostEstimate(
        flops=2 * M_pad * K * E_pad,
        transcendentals=0,
        bytes_accessed=(M_pad * K * in_bytes + K * E_pad * in_bytes
                        + 3 * E_pad * 4 + M_pad * E_pad * out_bytes))

    kernel = functools.partial(_patch_embed_kernel, apply_norm=apply_norm,
                               eps=eps, inv_e=1.0 / E)
    out = pl.pallas_call(
        kernel,
        out_shape=jax.ShapeDtypeStruct((M_pad, E_pad), out_dtype),
        grid=(num_tiles,),
        in_specs=[
            pl.BlockSpec((tm, K), lambda i: (i, 0)),       # patch rows
            pl.BlockSpec((K, E_pad), lambda i: (0, 0)),    # projection weight
            pl.BlockSpec((1, E_pad), lambda i: (0, 0)),    # conv bias
            pl.BlockSpec((1, E_pad), lambda i: (0, 0)),    # LayerNorm gamma
            pl.BlockSpec((1, E_pad), lambda i: (0, 0)),    # LayerNorm beta
        ],
        out_specs=pl.BlockSpec((tm, E_pad), lambda i: (i, 0)),
        compiler_params=pltpu.CompilerParams(
            dimension_semantics=("parallel",),
            vmem_limit_bytes=32 * 1024 * 1024),
        cost_estimate=cost,
    )(patches, w2d, b_p.reshape(1, E_pad), g_p.reshape(1, E_pad),
      bb_p.reshape(1, E_pad))

    # TODO(synk): downstream consumers that can take E_pad channels directly
    # should skip this trailing slice (it re-copies the output stream in XLA).
    return out[:M, :E].reshape(B, Hp, Wp, E)


# ----------------------------------------------------------------------------
# Self-test
# ----------------------------------------------------------------------------

if __name__ == "__main__":
    key = jax.random.PRNGKey(0)
    k1, k2, k3, k4, k5, k6 = jax.random.split(key, 6)

    B, Cin, E, p = 2, 3, 96, 4
    w = jax.random.normal(k1, (E, Cin, p, p), jnp.float32) * 0.1
    b = jax.random.normal(k2, (E,), jnp.float32) * 0.1
    gamma = 1.0 + 0.1 * jax.random.normal(k3, (E,), jnp.float32)
    beta = 0.1 * jax.random.normal(k4, (E,), jnp.float32)

    def ref(x, use_norm):
        out = jax.lax.conv_general_dilated(
            x, w, window_strides=(p, p), padding="VALID",
            dimension_numbers=("NCHW", "OIHW", "NCHW"),
            precision=jax.lax.Precision.HIGHEST)
        out = out + b[None, :, None, None]
        out = jnp.transpose(out, (0, 2, 3, 1))
        if use_norm:
            mu = jnp.mean(out, axis=-1, keepdims=True)
            var = jnp.mean((out - mu) ** 2, axis=-1, keepdims=True)
            out = (out - mu) / jnp.sqrt(var + 1e-5) * gamma + beta
        return out

    # Config A: norm_layer=None, f32-strict path (default PatchEmbed2D).
    xA = jax.random.normal(k5, (B, Cin, 16, 16), jnp.float32)
    fA = jax.jit(functools.partial(patch_embed_2d, patch_size=p,
                                   use_bf16=False))
    outA = jax.block_until_ready(fA(xA, w, b))
    refA = ref(xA, False)
    assert outA.shape == (B, 4, 4, E) and outA.dtype == jnp.float32
    assert float(jnp.max(jnp.abs(outA - refA))) < 2e-4

    # Config B: norm_layer=nn.LayerNorm, f32 path (fused lane-padded norm
    # epilogue, one-pass stats). Also exercises gamma-without-beta guard.
    outB = jax.block_until_ready(fA(xA, w, b, gamma, beta))
    refB = ref(xA, True)
    assert outB.shape == (B, 4, 4, E)
    assert float(jnp.max(jnp.abs(outB - refB))) < 1e-3
    _ = jax.block_until_ready(fA(xA, w, b, gamma))          # beta defaults to 0

    # Config C: default bf16 path (bf16 operands + bf16 output), non-multiple
    # spatial dims (floored like Conv2d), padded last row tile.
    xC = jax.random.normal(k6, (B, Cin, 18, 22), jnp.float32)
    fC = jax.jit(functools.partial(patch_embed_2d, patch_size=p))
    outC = jax.block_until_ready(fC(xC, w, b, gamma, beta))
    refC = ref(xC[:, :, :16, :20], True)
    assert outC.shape == (B, 4, 5, E) and outC.dtype == jnp.bfloat16
    assert float(jnp.max(jnp.abs(outC.astype(jnp.float32) - refC))) < 1e-1

    print("KERNEL_OK")
</pallas_src>

<mosaic_0001>
module attributes {stable_mosaic.version = 11 : i64} {
  func.func @_patch_embed_kernel(%arg0: i32, %arg1: memref<16x48xf32, #tpu.memory_space<vmem>>, %arg2: memref<48x128xf32, #tpu.memory_space<vmem>>, %arg3: memref<1x128xf32, #tpu.memory_space<vmem>>, %arg4: memref<1x128xf32, #tpu.memory_space<vmem>>, %arg5: memref<1x128xf32, #tpu.memory_space<vmem>>, %arg6: memref<16x128xf32, #tpu.memory_space<vmem>>) attributes {dimension_semantics = [#tpu.dimension_semantics<parallel>], iteration_bounds = array<i64: 2>, scalar_prefetch = 0 : i64, scratch_operands = 0 : i64, tpu.core_type = #tpu.core_type<tc>, window_params = [{transform_indices = @transform_0, window_bounds = array<i64: 16, 48>}, {pipeline_mode = #tpu.pipeline_mode<synchronous>, transform_indices = @transform_1, window_bounds = array<i64: 48, 128>}, {pipeline_mode = #tpu.pipeline_mode<synchronous>, transform_indices = @transform_2, window_bounds = array<i64: 1, 128>}, {pipeline_mode = #tpu.pipeline_mode<synchronous>, transform_indices = @transform_3, window_bounds = array<i64: 1, 128>}, {pipeline_mode = #tpu.pipeline_mode<synchronous>, transform_indices = @transform_4, window_bounds = array<i64: 1, 128>}, {transform_indices = @transform_5, window_bounds = array<i64: 16, 128>}]} {
    %c0 = arith.constant 0 : index
    %c0_0 = arith.constant 0 : index
    %0 = vector.load %arg1[%c0, %c0_0] : memref<16x48xf32, #tpu.memory_space<vmem>>, vector<16x48xf32>
    %c0_1 = arith.constant 0 : index
    %c0_2 = arith.constant 0 : index
    %1 = vector.load %arg2[%c0_1, %c0_2] : memref<48x128xf32, #tpu.memory_space<vmem>>, vector<48x128xf32>
    %cst = arith.constant dense<0.000000e+00> : vector<16x128xf32>
    %2 = tpu.matmul %0, %1, %cst {dimension_numbers = #tpu.dot_dimension_numbers<[1], [0], [0], [1], [0, 0, 1, 1], [], []>} : vector<16x48xf32>, vector<48x128xf32>, vector<16x128xf32> -> vector<16x128xf32>
    %c0_3 = arith.constant 0 : index
    %c0_4 = arith.constant 0 : index
    %3 = vector.load %arg3[%c0_3, %c0_4] : memref<1x128xf32, #tpu.memory_space<vmem>>, vector<1x128xf32>
    %4 = vector.broadcast %3 : vector<1x128xf32> to vector<16x128xf32>
    %5 = arith.addf %2, %4 : vector<16x128xf32>
    %c0_5 = arith.constant 0 : index
    %c0_6 = arith.constant 0 : index
    %6 = vector.load %arg6[%c0_5, %c0_6] : memref<16x128xf32, #tpu.memory_space<vmem>>, vector<16x128xf32>
    tpu.vector_store %arg6[%c0_5, %c0_6], %5 {strides = array<i32>} : memref<16x128xf32, #tpu.memory_space<vmem>>, vector<16x128xf32>,
    return
  }
  func.func @transform_0(%arg0: i32) -> (i32, i32) {
    %c0_i32 = arith.constant 0 : i32
    %c0_i32_0 = arith.constant 0 : i32
    return %arg0, %c0_i32 : i32, i32
  }
  func.func @transform_1(%arg0: i32) -> (i32, i32) {
    %c0_i32 = arith.constant 0 : i32
    %c0_i32_0 = arith.constant 0 : i32
    %c0_i32_1 = arith.constant 0 : i32
    return %c0_i32, %c0_i32_0 : i32, i32
  }
  func.func @transform_2(%arg0: i32) -> (i32, i32) {
    %c0_i32 = arith.constant 0 : i32
    %c0_i32_0 = arith.constant 0 : i32
    %c0_i32_1 = arith.constant 0 : i32
    return %c0_i32, %c0_i32_0 : i32, i32
  }
  func.func @transform_3(%arg0: i32) -> (i32, i32) {
    %c0_i32 = arith.constant 0 : i32
    %c0_i32_0 = arith.constant 0 : i32
    %c0_i32_1 = arith.constant 0 : i32
    return %c0_i32, %c0_i32_0 : i32, i32
  }
  func.func @transform_4(%arg0: i32) -> (i32, i32) {
    %c0_i32 = arith.constant 0 : i32
    %c0_i32_0 = arith.constant 0 : i32
    %c0_i32_1 = arith.constant 0 : i32
    return %c0_i32, %c0_i32_0 : i32, i32
  }
  func.func @transform_5(%arg0: i32) -> (i32, i32) {
    %c0_i32 = arith.constant 0 : i32
    %c0_i32_0 = arith.constant 0 : i32
    return %arg0, %c0_i32 : i32, i32
  }
}

</mosaic_0001>

<llo_original>
// kernel: patch_embed_2d.1
$region0: #{patch_embed_2d.1}
  #allocation0 [shape = 'u32[]', space=smem, size = 0x4, offset = 0x4, fixed_abs, tag = 'smem constant byte address 0x4 - core index']
  #allocation1 [shape = 'u32[144,128]{1,0:T(1,128)}', space=vmem, size = 0x12000, scoped, tag = 'internal scratch']
  %s0 = inlined_call_operand.vmem [shape: f32[32,48], index: 0, kind: input, shape index: {}]
  %s1 = inlined_call_operand.vmem [shape: f32[48,128], index: 1, kind: input, shape index: {}]
  %s2 = inlined_call_operand.vmem [shape: f32[1,128], index: 2, kind: input, shape index: {}]
  %s3 = inlined_call_operand.vmem [shape: f32[1,128], index: 3, kind: input, shape index: {}]
  %s4 = inlined_call_operand.vmem [shape: f32[1,128], index: 4, kind: input, shape index: {}]
  %s5 = inlined_call_operand.hbm [shape: f32[32,128], index: 5, kind: output, shape index: {}]
  %s6 = sld [smem:[#allocation0]]
  $region53: #{patch_embed_2d.1} parent=0
    _
  %s8 = ssub.s32 1, %s6
  %s9 = scalar_select 0, %s8, %s6
  $region1: #{patch_embed_2d.1} parent=0
    #allocation2 [shape = 'u8[16384]{0}', space=vmem, size = 0x4000, scoped, tag = 'output window, operand 0']
    #allocation3 [shape = 's32[2]{0}', space=sflag, size = 0x8, scoped, tag = 'scoped memory for patch_embed_2d.1']
    %10 = vsyncpa [#allocation3], 0
    %s11 = scalar_lea.sflag [#allocation3], 1
    %12 = vsyncpa %s11, 0
    loop: start=0, step=1, limit=4
    $region2: #{patch_embed_2d.1} parent=1 // loop_pre_header
      _
    $region3: #{patch_embed_2d.1} parent=1 // loop_header
      %s14 = sphi 0, %s18
      %p15 = scmp.ge.s32.totalorder %s14, 4
      %s24 = sphi 0, %s26
      %s27 = sphi 0, %s24
      %s28 = sphi 0, %s27
      %s44 = sphi 0, %s28
      %s48 = sphi 0, %s48
      %s50 = sphi 0, %s48
      %s51 = sphi 0, %s50
      %s65 = sphi 0, %s51
      %s69 = sphi 0, %s69
      %s71 = sphi 0, %s69
      %s72 = sphi 0, %s71
      %s86 = sphi 0, %s72
      %s90 = sphi 0, %s90
      %s92 = sphi 0, %s90
      %s93 = sphi 0, %s92
      %s107 = sphi 0, %s93
      %s111 = sphi 0, %s111
      %s113 = sphi 0, %s111
      %s114 = sphi 0, %s113
      %s128 = sphi 0, %s114
      %s134 = sphi 0, %s136
      %s137 = sphi 0, %s134
      %s138 = sphi 0, %s137
      %s154 = sphi 0, %s138
    $region4: #{patch_embed_2d.1} parent=1 // loop_header_branch
      %17 = sbr.rel (%p15) target = $region8
    $region5: #{patch_embed_2d.1} parent=1 // loop_body
      %s19 = ssub.s32 %s14, 1
      %s20 = ssub.s32 %s14, 2
      %s21 = sadd.s32 %s14, 1
      %s22 = ssub.s32 %s14, %s21
      %p23 = scmp.eq.s32.totalorder %s22, 0
      %s25 = sadd.s32 %s24, 1
      %s26 = scalar_select %p23, %s24, %s25
      %p29 = pneg %p23
      %p30 = scmp.eq.s32.totalorder %s14, 1
      %p31 = por %p29, %p30
      %p32 = scmp.ne.s32.totalorder %s24, %s27
      %p33 = scmp.eq.s32.totalorder %s14, 0
      %p34 = por %p32, %p33
      %p35 = scmp.ne.s32.totalorder %s24, %s27
      %p36 = scmp.eq.s32.totalorder %s19, 1
      %p37 = por %p35, %p36
      %p38 = scmp.ne.s32.totalorder %s27, %s28
      %p39 = scmp.eq.s32.totalorder %s19, 0
      %p40 = por %p38, %p39
      %p41 = scmp.ne.s32.totalorder %s27, %s28
      %p42 = scmp.eq.s32.totalorder %s20, 1
      %p43 = por %p41, %p42
      %p45 = scmp.ne.s32.totalorder %s28, %s44
      %p46 = scmp.eq.s32.totalorder %s20, 0
      %p47 = por %p45, %p46
      %s49 = sadd.s32 %s48, 1
      %p52 = scmp.eq.s32.totalorder %s14, 1
      %p53 = scmp.ne.s32.totalorder %s48, %s50
      %p54 = scmp.eq.s32.totalorder %s14, 0
      %p55 = por %p53, %p54
      %p56 = scmp.ne.s32.totalorder %s48, %s50
      %p57 = scmp.eq.s32.totalorder %s19, 1
      %p58 = por %p56, %p57
      %p59 = scmp.ne.s32.totalorder %s50, %s51
      %p60 = scmp.eq.s32.totalorder %s19, 0
      %p61 = por %p59, %p60
      %p62 = scmp.ne.s32.totalorder %s50, %s51
      %p63 = scmp.eq.s32.totalorder %s20, 1
      %p64 = por %p62, %p63
      %p66 = scmp.ne.s32.totalorder %s51, %s65
      %p67 = scmp.eq.s32.totalorder %s20, 0
      %p68 = por %p66, %p67
      %s70 = sadd.s32 %s69, 1
      %p73 = scmp.eq.s32.totalorder %s14, 1
      %p74 = scmp.ne.s32.totalorder %s69, %s71
      %p75 = scmp.eq.s32.totalorder %s14, 0
      %p76 = por %p74, %p75
      %p77 = scmp.ne.s32.totalorder %s69, %s71
      %p78 = scmp.eq.s32.totalorder %s19, 1
      %p79 = por %p77, %p78
      %p80 = scmp.ne.s32.totalorder %s71, %s72
      %p81 = scmp.eq.s32.totalorder %s19, 0
      %p82 = por %p80, %p81
      %p83 = scmp.ne.s32.totalorder %s71, %s72
      %p84 = scmp.eq.s32.totalorder %s20, 1
      %p85 = por %p83, %p84
      %p87 = scmp.ne.s32.totalorder %s72, %s86
      %p88 = scmp.eq.s32.totalorder %s20, 0
      %p89 = por %p87, %p88
      %s91 = sadd.s32 %s90, 1
      %p94 = scmp.eq.s32.totalorder %s14, 1
      %p95 = scmp.ne.s32.totalorder %s90, %s92
      %p96 = scmp.eq.s32.totalorder %s14, 0
      %p97 = por %p95, %p96
      %p98 = scmp.ne.s32.totalorder %s90, %s92
      %p99 = scmp.eq.s32.totalorder %s19, 1
      %p100 = por %p98, %p99
      %p101 = scmp.ne.s32.totalorder %s92, %s93
      %p102 = scmp.eq.s32.totalorder %s19, 0
      %p103 = por %p101, %p102
      %p104 = scmp.ne.s32.totalorder %s92, %s93
      %p105 = scmp.eq.s32.totalorder %s20, 1
      %p106 = por %p104, %p105
      %p108 = scmp.ne.s32.totalorder %s93, %s107
      %p109 = scmp.eq.s32.totalorder %s20, 0
      %p110 = por %p108, %p109
      %s112 = sadd.s32 %s111, 1
      %p115 = scmp.eq.s32.totalorder %s14, 1
      %p116 = scmp.ne.s32.totalorder %s111, %s113
      %p117 = scmp.eq.s32.totalorder %s14, 0
      %p118 = por %p116, %p117
      %p119 = scmp.ne.s32.totalorder %s111, %s113
      %p120 = scmp.eq.s32.totalorder %s19, 1
      %p121 = por %p119, %p120
      %p122 = scmp.ne.s32.totalorder %s113, %s114
      %p123 = scmp.eq.s32.totalorder %s19, 0
      %p124 = por %p122, %p123
      %p125 = scmp.ne.s32.totalorder %s113, %s114
      %p126 = scmp.eq.s32.totalorder %s20, 1
      %p127 = por %p125, %p126
      %p129 = scmp.ne.s32.totalorder %s114, %s128
      %p130 = scmp.eq.s32.totalorder %s20, 0
      %p131 = por %p129, %p130
      %s132 = ssub.s32 %s14, %s21
      %p133 = scmp.eq.s32.totalorder %s132, 0
      %s135 = sadd.s32 %s134, 1
      %s136 = scalar_select %p133, %s134, %s135
      %p139 = pneg %p133
      %p140 = scmp.eq.s32.totalorder %s14, 1
      %p141 = por %p139, %p140
      %p142 = scmp.ne.s32.totalorder %s134, %s137
      %p143 = scmp.eq.s32.totalorder %s14, 0
      %p144 = por %p142, %p143
      %p145 = scmp.ne.s32.totalorder %s134, %s137
      %p146 = scmp.eq.s32.totalorder %s19, 1
      %p147 = por %p145, %p146
      %p148 = scmp.ne.s32.totalorder %s137, %s138
      %p149 = scmp.eq.s32.totalorder %s19, 0
      %p150 = por %p148, %p149
      %p151 = scmp.ne.s32.totalorder %s137, %s138
      %p152 = scmp.eq.s32.totalorder %s20, 1
      %p153 = por %p151, %p152
      %p155 = scmp.ne.s32.totalorder %s138, %s154
      %p156 = scmp.eq.s32.totalorder %s20, 0
      %p157 = por %p155, %p156
      %p158 = scmp.le.s32.totalorder 1, %s14
      %p159 = scmp.lt.s32.totalorder %s14, 3
      %p160 = pnand %p158, %p159
      %p161 = pneg %p160
      // Predicated region
      $region9: #{patch_embed_2d.1} parent=5 // pred_check
        _
      $region10: #{patch_embed_2d.1} parent=5 // pred_check_branch
        %163 = sbr.rel (%p160) target = $region12
      $region11: #{patch_embed_2d.1} parent=5 // pred_region
        %s164 = ssub.s32 %s14, 1
        // Predicated region
        $region13: #{patch_embed_2d.1} parent=11 // pred_check
          %p165 = pneg %p61
        $region14: #{patch_embed_2d.1} parent=11 // pred_check_branch
          %167 = sbr.rel (%p165) target = $region16
        $region15: #{patch_embed_2d.1} parent=11 // pred_region
          _
        $region16: #{patch_embed_2d.1} parent=11 // pred_fallthru
          _
        // Predicated region
        $region17: #{patch_embed_2d.1} parent=11 // pred_check
          %p168 = pneg %p82
        $region18: #{patch_embed_2d.1} parent=11 // pred_check_branch
          %170 = sbr.rel (%p168) target = $region20
        $region19: #{patch_embed_2d.1} parent=11 // pred_region
          _
        $region20: #{patch_embed_2d.1} parent=11 // pred_fallthru
          _
        // Predicated region
        $region21: #{patch_embed_2d.1} parent=11 // pred_check
          %p171 = pneg %p103
        $region22: #{patch_embed_2d.1} parent=11 // pred_check_branch
          %173 = sbr.rel (%p171) target = $region24
        $region23: #{patch_embed_2d.1} parent=11 // pred_region
          _
        $region24: #{patch_embed_2d.1} parent=11 // pred_fallthru
          _
        // Predicated region
        $region25: #{patch_embed_2d.1} parent=11 // pred_check
          %p174 = pneg %p124
        $region26: #{patch_embed_2d.1} parent=11 // pred_check_branch
          %176 = sbr.rel (%p174) target = $region28
        $region27: #{patch_embed_2d.1} parent=11 // pred_region
          _
        $region28: #{patch_embed_2d.1} parent=11 // pred_fallthru
          _
      $region12: #{patch_embed_2d.1} parent=5 // pred_fallthru
        _
      %p177 = scmp.lt.s32.totalorder %s14, 2
      // Predicated region
      $region29: #{patch_embed_2d.1} parent=5 // pred_check
        %p178 = pneg %p177
      $region30: #{patch_embed_2d.1} parent=5 // pred_check_branch
        %180 = sbr.rel (%p178) target = $region32
      $region31: #{patch_embed_2d.1} parent=5 // pred_region
        // Predicated region
        $region33: #{patch_embed_2d.1} parent=31 // pred_check
          %p181 = pneg %p34
        $region34: #{patch_embed_2d.1} parent=31 // pred_check_branch
          %183 = sbr.rel (%p181) target = $region36
        $region35: #{patch_embed_2d.1} parent=31 // pred_region
          %s184 = smul.u32 2, %s14
          %p185 = scmp.lt.s32.totalorder %s184, 3
          %s186 = scalar_select %p185, %s184, 3
          %s187 = smul.addr %s186, 8
          %s188 = scalar_lea.vmem %s0, %s187
          %s189 = smul.u32 2, %s14
        $region36: #{patch_embed_2d.1} parent=31 // pred_fallthru
          _
      $region32: #{patch_embed_2d.1} parent=5 // pred_fallthru
        _
      %p190 = scmp.le.s32.totalorder 1, %s14
      %p191 = scmp.lt.s32.totalorder %s14, 3
      %p192 = pnand %p190, %p191
      %p193 = pneg %p192
      // Predicated region
      $region37: #{patch_embed_2d.1} parent=5 // pred_check
        _
      $region38: #{patch_embed_2d.1} parent=5 // pred_check_branch
        %195 = sbr.rel (%p192) target = $region40
      $region39: #{patch_embed_2d.1} parent=5 // pred_region
        %s196 = ssub.s32 %s14, 1
        %s197 = smul.u32 2, %s19
        %p198 = scmp.lt.s32.totalorder %s197, 3
        %s199 = scalar_select %p198, %s197, 3
        %s200 = smul.addr %s199, 8
        %s201 = scalar_lea.vmem %s0, %s200
        %p202 = pneg %p40
        %p203 = pneg %p37
        %p204 = pneg %p61
        %p205 = pneg %p58
        %p206 = pneg %p82
        %p207 = pneg %p79
        %p208 = pneg %p103
        %p209 = pneg %p100
        %p210 = pneg %p124
        %p211 = pneg %p121
        %p212 = pneg %p150
        %p213 = pneg %p147
        %s214 = sand.u32 %s137, 1
        %s215 = scalar_lea.sflag [#allocation3], %s214
        %s216 = sand.u32 %s137, 1
        %s217 = smul.addr %s216, 16
        %s218 = scalar_lea.vmem [#allocation2], %s217
        %s219 = smul.u32 2, %s19
        %p220 = scmp.lt.s32.totalorder %s219, 3
        %s221 = scalar_select %p220, %s219, 3
        %s222 = smul.addr %s221, 8
        %s223 = scalar_lea.vmem %s0, %s222
        %s224 = smul.u32 2, %s19
        %s225 = smul.u32 2, %s19
        %v226 = vld [vmem:[%s223] sm:$0xff]
        %v227 = vld [vmem:[%s223 + $0x8] sm:$0xff]
        %v228 = vld [vmem:[%s1] sm:$0xff]
        %v229 = vld [vmem:[%s1 + $0x8] sm:$0xff]
        %v230 = vld [vmem:[%s1 + $0x10] sm:$0xff]
        %v231 = vld [vmem:[%s1 + $0x18] sm:$0xff]
        %v232 = vld [vmem:[%s1 + $0x20] sm:$0xff]
        %v233 = vld [vmem:[%s1 + $0x28] sm:$0xff]
        %v234 = vld [vmem:[%s2] sm:$0x1]
        %v236 = vlaneseq
        %v237 = vshrl.u32 %v236, 7
        %v238 = vsub.s32 0, %v237
        %v239 = vrot.slane %v234, %v238
        %vm241 = vcmask 392192
        %v243 = vsel %vm241, %v226, 0
        %v246 = vsel %vm241, %v227, 0
        %248 = vmatprep.subr.mxu0 0.0
        %249 = vmatpush1.msra.mxu0 0.0
        %250 = vmatprep.subr.mxu0 0.0
        %251 = vmatpush1.msra.mxu0 0.0
        %252 = vmatprep.subr.mxu0 0.0
        %253 = vmatpush1.msra.mxu0 0.0
        %254 = vmatprep.subr.mxu0 0.0
        %255 = vmatpush1.msra.mxu0 0.0
        %256 = vmatprep.subr.mxu0 0.0
        %257 = vmatpush1.msra.mxu0 0.0
        %258 = vmatprep.subr.mxu0 0.0
        %259 = vmatpush1.msra.mxu0 0.0
        %260 = vmatprep.subr.mxu0 0.0
        %261 = vmatpush1.msra.mxu0 0.0
        %262 = vmatprep.subr.mxu0 0.0
        %263 = vmatpush1.msra.mxu0 0.0
        %264 = vmatprep.subr.mxu0 0.0
        %265 = vmatpush1.msra.mxu0 0.0
        %266 = vmatprep.subr.mxu0 0.0
        %267 = vmatpush1.msra.mxu0 0.0
        %268 = vmatprep.subr.mxu0 0.0
        %269 = vmatpush1.msra.mxu0 %v233
        %270 = vmatprep.subr.mxu0 0.0
        %271 = vmatpush1.msra.mxu0 %v232
        %272 = vmatprep.subr.mxu0 0.0
        %273 = vmatpush1.msra.mxu0 %v231
        %274 = vmatprep.subr.mxu0 0.0
        %275 = vmatpush1.msra.mxu0 %v230
        %276 = vmatprep.subr.mxu0 0.0
        %277 = vmatpush1.msra.mxu0 %v229
        %278 = vmatprep.subr.mxu0 0.0
        %279 = vmatpush1.msra.mxu0 %v228
        %280 = vmatprep.subr.mxu0 0.0
        %281 = vmatpush2.msra.mxu0 0.0
        %282 = vmatprep.subr.mxu0 0.0
        %283 = vmatpush2.msra.mxu0 0.0
        %284 = vmatprep.subr.mxu0 0.0
        %285 = vmatpush2.msra.mxu0 0.0
        %286 = vmatprep.subr.mxu0 0.0
        %287 = vmatpush2.msra.mxu0 0.0
        %288 = vmatprep.subr.mxu0 0.0
        %289 = vmatpush2.msra.mxu0 0.0
        %290 = vmatprep.subr.mxu0 0.0
        %291 = vmatpush2.msra.mxu0 0.0
        %292 = vmatprep.subr.mxu0 0.0
        %293 = vmatpush2.msra.mxu0 0.0
        %294 = vmatprep.subr.mxu0 0.0
        %295 = vmatpush2.msra.mxu0 0.0
        %296 = vmatprep.subr.mxu0 0.0
        %297 = vmatpush2.msra.mxu0 0.0
        %298 = vmatprep.subr.mxu0 0.0
        %299 = vmatpush2.msra.mxu0 0.0
        %300 = vmatprep.subr.mxu0 0.0
        %301 = vmatpush2.msra.mxu0 0.0
        %302 = vmatprep.subr.mxu0 0.0
        %303 = vmatpush2.msra.mxu0 0.0
        %304 = vmatprep.subr.mxu0 0.0
        %305 = vmatpush2.msra.mxu0 0.0
        %306 = vmatprep.subr.mxu0 0.0
        %307 = vmatpush2.msra.mxu0 0.0
        %308 = vmatprep.subr.mxu0 0.0
        %309 = vmatpush2.msra.mxu0 0.0
        %310 = vmatprep.subr.mxu0 0.0
        %311 = vmatpush2.msra.mxu0 0.0
        %312 = vmatprep.mubr.f32.mxu0 0.0
        %313 = vmatmul.mubr.f32.gmra.mxu0 %v243
        %v314 = vpop.f32.mrf.mxu0
        %v315 = vadd.f32 %v239, %v314
        %v316 = vpop.f32.mrf.mxu0
        %317 = vmatprep.mubr.f32.mxu0 0.0
        %318 = vmatmul.mubr.f32.gmra.mxu0 %v246
        %v319 = vpop.f32.mrf.mxu0
        %v320 = vadd.f32 %v239, %v319
        %v321 = vpop.f32.mrf.mxu0
        %322 = vdwg.mxu0
        %323 = vst [vmem:[%s218] sm:$0xff] %v315
        %324 = vst [vmem:[%s218 + $0x8] sm:$0xff] %v320
        %s325 = sand.u32 %s137, 1
        %s326 = scalar_lea.sflag [#allocation3], %s325
        %s327 = sand.u32 %s137, 1
        %s328 = smul.addr %s327, 16
        %s329 = scalar_lea.vmem [#allocation2], %s328
        // Predicated region
        $region41: #{patch_embed_2d.1} parent=39 // pred_check
          %p330 = pneg %p147
        $region42: #{patch_embed_2d.1} parent=39 // pred_check_branch
          %332 = sbr.rel (%p330) target = $region44
        $region43: #{patch_embed_2d.1} parent=39 // pred_region
          %s333 = smul.u32 2, %s19
          %s335 = ssub.s32 256, 256
          %336 = vsyncadd %s326, %s335
          %s337 = smul.addr %s333, 128
          %s338 = scalar_lea.hbm %s5, %s337
          %s339 = sshll.u32 %s329, 4
          %s340 = int_to_ptr.vmem [resolvable:$true] %s339
          %345 = dma.vmem_to_hbm [thread:$0]  %s340, 256, %s338, %s326, 128, 128, 8
        $region44: #{patch_embed_2d.1} parent=39 // pred_fallthru
          _
      $region40: #{patch_embed_2d.1} parent=5 // pred_fallthru
        _
      %p346 = scmp.le.s32.totalorder 2, %s14
      // Predicated region
      $region45: #{patch_embed_2d.1} parent=5 // pred_check
        %p347 = pneg %p346
      $region46: #{patch_embed_2d.1} parent=5 // pred_check_branch
        %349 = sbr.rel (%p347) target = $region48
      $region47: #{patch_embed_2d.1} parent=5 // pred_region
        %s350 = ssub.s32 %s14, 2
        // Predicated region
        $region49: #{patch_embed_2d.1} parent=47 // pred_check
          %p351 = pneg %p153
        $region50: #{patch_embed_2d.1} parent=47 // pred_check_branch
          %353 = sbr.rel (%p351) target = $region52
        $region51: #{patch_embed_2d.1} parent=47 // pred_region
          %s354 = sand.u32 %s138, 1
          %s355 = scalar_lea.sflag [#allocation3], %s354
          %s356 = sand.u32 %s138, 1
          %s357 = smul.addr %s356, 16
          %s358 = scalar_lea.vmem [#allocation2], %s357
          %359 = dma.done %s355, 256
        $region52: #{patch_embed_2d.1} parent=47 // pred_fallthru
          _
      $region48: #{patch_embed_2d.1} parent=5 // pred_fallthru
        _
    $region6: #{patch_embed_2d.1} parent=1 // loop_footer
      %s18 = sadd.s32 1, %s14
    $region7: #{patch_embed_2d.1} parent=1 // loop_footer_branch
      %13 = sbr.rel target = $region3
    $region8: #{patch_embed_2d.1} parent=1 // loop_exit
      _
    %360 = vsyncpa [#allocation3], 1
    %s361 = scalar_lea.sflag [#allocation3], 1
    %362 = vsyncpa %s361, 1

</llo_original>
